<compile_context>
chip_gen: v5e
topology: v5e:2x2
jax: 0.10.0
libtpu: 0.0.40
codegen_flags: <defaults>
</compile_context>

<pallas_src>
import jax
import jax.numpy as jnp
from jax import lax
from jax.experimental import pallas as pl
from jax.experimental.pallas import tpu as pltpu


# ------------------------------ Pallas kernel ------------------------------ #

def _side_mid_fused_kernel(p_ref, wc_ref, poolt_ref, fw1_ref, fw2_ref, fb_ref, out_ref):
    """Fused SideMIDBreastModel forward (both views + pooling + final FC).

    p_ref    : (K+1, 2B*HW) im2col patches for the 2B view-images, pixels on lanes,
                             last row = ones (conv-bias fold).
    wc_ref   : (C, K+1)      conv weight transposed, last column = conv bias.
    poolt_ref: (2B, 2B*HW)   block-diagonal averaging matrix (entries 1/HW).
    fw1_ref  : (C, NCLS)     fc weight rows acting on view-1 (CC) features.
    fw2_ref  : (C, NCLS)     fc weight rows acting on view-2 (MLO) features.
    fb_ref   : (1, NCLS)     fc bias.
    out_ref  : (8+, 128)     padded output slab; logits land in [:B, :NCLS].
    """
    # Conv3x3 (as matmul, bias folded) + ReLU, lane-dense: (C, K+1) @ (K+1, 2B*HW).
    h = jnp.maximum(
        jnp.dot(wc_ref[...], p_ref[...], preferred_element_type=jnp.float32), 0.0)

    # Global average pool per view-image on the MXU: contract the pixel (lane) axis
    # against the averaging matrix.  pooled_t[n, c] = mean over image-n pixels of h[c, :].
    pooled_t = jnp.einsum('nl,cl->nc', poolt_ref[...], h,
                          preferred_element_type=jnp.float32)            # (2B, C)

    b = poolt_ref.shape[0] // 2
    ncls = fw1_ref.shape[1]

    # torch.cat([x1_2, x2_2], dim=1) + Linear(2C, 2)  ==  split FC into two matmuls.
    res = (jnp.dot(pooled_t[:b], fw1_ref[...], preferred_element_type=jnp.float32)
           + jnp.dot(pooled_t[b:], fw2_ref[...], preferred_element_type=jnp.float32)
           + fb_ref[...])                                                # (B, NCLS)

    # One dense (8,128)-aligned store; the tiny valid block goes into the corner.
    out_ref[...] = jnp.zeros_like(out_ref)
    out_ref[0:b, 0:ncls] = res


# ------------------------------- JAX wrapper -------------------------------- #

def _im2col_lane_dense(x_nchw, kh, kw):
    """(N, Cin, H, W) -> (N, Cin*kh*kw, H*W), SAME padding, stride 1 (pixels last)."""
    patches = lax.conv_general_dilated_patches(
        x_nchw, (kh, kw), (1, 1), "SAME",
        dimension_numbers=("NCHW", "OIHW", "NCHW"))          # (N, K, H, W)
    n, k, h, w = patches.shape
    return patches.reshape(n, k, h * w)


class SideMIDBreastModelPallas:
    """JAX/Pallas SideMIDBreastModel (n_blocks=0, avg_pool=True) with a synthetic
    Conv3x3+ReLU stand-in for the pretrained per-view feature extractor."""

    def __init__(self, in_ch=3, feat_ch=32, num_classes=2, kernel=3, seed=42):
        self.in_ch = in_ch
        self.feat_ch = feat_ch
        self.num_classes = num_classes
        self.kernel = kernel
        k = in_ch * kernel * kernel
        keys = jax.random.split(jax.random.PRNGKey(seed), 4)
        # TODO(synk): the real model loads pretrained ResNet50/EfficientNet backbone
        # weights via torch.load; a synthetic Conv3x3(3->feat_ch)+ReLU stands in here.
        self.conv_wt = jax.random.normal(keys[0], (feat_ch, k), jnp.float32) * 0.1   # (C, K)
        self.conv_b = jax.random.normal(keys[1], (feat_ch,), jnp.float32) * 0.1       # (C,)
        fc_w = jax.random.normal(keys[2], (2 * feat_ch, num_classes), jnp.float32) * 0.1
        self.fc_w1 = fc_w[:feat_ch]                                                    # (C, NCLS)
        self.fc_w2 = fc_w[feat_ch:]                                                    # (C, NCLS)
        self.fc_b_row = jax.random.normal(keys[3], (1, num_classes), jnp.float32) * 0.1

    def _operands(self, x):
        b, c, hh, ww = x.shape
        assert c == 2 * self.in_ch, "expected a 6-channel (two 3-channel views) input"
        hw = hh * ww
        n = 2 * b

        # Stack the two views along batch and im2col with pixels on the last axis.
        views = jnp.concatenate([x[:, :self.in_ch], x[:, self.in_ch:]], axis=0)       # (2B, 3, H, W)
        patches = _im2col_lane_dense(views.astype(jnp.float32), self.kernel, self.kernel)  # (2B, K, HW)
        k = patches.shape[1]
        assert k == self.in_ch * self.kernel * self.kernel

        # Lane-dense patch slab: image n occupies lanes [n*HW, (n+1)*HW).
        p2d = patches.transpose(1, 0, 2).reshape(k, n * hw)                            # (K, 2B*HW)
        p_aug = jnp.concatenate([p2d, jnp.ones((1, n * hw), jnp.float32)], axis=0)     # (K+1, 2B*HW)
        wc_aug = jnp.concatenate([self.conv_wt, self.conv_b[:, None]], axis=1)         # (C, K+1)

        # Block-diagonal average-pool matrix with the 1/HW scale folded in.
        pool_t = jnp.repeat(jnp.eye(n, dtype=jnp.float32), hw, axis=1) / float(hw)     # (2B, 2B*HW)
        return p_aug, wc_aug, pool_t, b, n, hw, k

    def __call__(self, x):
        p_aug, wc_aug, pool_t, b, n, hw, k = self._operands(x)
        ncls = self.num_classes
        rows = max(8, ((b + 7) // 8) * 8)     # (8,128)-aligned output slab

        out_pad = pl.pallas_call(
            _side_mid_fused_kernel,
            out_shape=jax.ShapeDtypeStruct((rows, 128), jnp.float32),
            grid=(1,),                         # single fused step: whole problem fits VMEM
            in_specs=[
                pl.BlockSpec((k + 1, n * hw), lambda i: (0, 0)),
                pl.BlockSpec((self.feat_ch, k + 1), lambda i: (0, 0)),
                pl.BlockSpec((n, n * hw), lambda i: (0, 0)),
                pl.BlockSpec((self.feat_ch, ncls), lambda i: (0, 0)),
                pl.BlockSpec((self.feat_ch, ncls), lambda i: (0, 0)),
                pl.BlockSpec((1, ncls), lambda i: (0, 0)),
            ],
            out_specs=pl.BlockSpec((rows, 128), lambda i: (0, 0)),
            compiler_params=pltpu.CompilerParams(
                dimension_semantics=("arbitrary",)),
        )(p_aug, wc_aug, pool_t, self.fc_w1, self.fc_w2, self.fc_b_row)

        # TODO(synk): n_blocks=1/2 top blocks (Bottleneck / MBConvBlock) are not
        # implemented; this covers the n_blocks=0 ("only FC layer"), avg_pool=True path.
        return out_pad[:b, :ncls]


# ----------------------------- plain-JAX reference -------------------------- #

def reference_forward(model, x):
    """Independent (non-Pallas) forward used to verify the fused kernel."""
    def view_feats(xv):
        p = _im2col_lane_dense(xv.astype(jnp.float32), model.kernel, model.kernel)  # (B, K, HW)
        h = jnp.einsum('ck,bkl->bcl', model.conv_wt, p) + model.conv_b[None, :, None]
        h = jnp.maximum(h, 0.0)
        return jnp.mean(h, axis=-1)                                                  # (B, C)
    f1 = view_feats(x[:, :model.in_ch])
    f2 = view_feats(x[:, model.in_ch:])
    feat = jnp.concatenate([f1, f2], axis=1)                                         # (B, 2C)
    fc_w = jnp.concatenate([model.fc_w1, model.fc_w2], axis=0)
    return feat @ fc_w + model.fc_b_row                                              # (B, 2)


# ---------------------------------- driver ---------------------------------- #

if __name__ == "__main__":
    model = SideMIDBreastModelPallas(in_ch=3, feat_ch=32, num_classes=2)

    key = jax.random.PRNGKey(0)
    x = jax.random.normal(key, (2, 6, 16, 16), dtype=jnp.float32)   # B=2, two 3-channel views

    out = jax.block_until_ready(model(x))
    assert out.shape == (2, 2) and out.dtype == jnp.float32

    ref = jax.block_until_ready(reference_forward(model, x))
    assert bool(jnp.allclose(out, ref, rtol=2e-2, atol=2e-2)), (out, ref)

    print("KERNEL_OK")
</pallas_src>

<mosaic_0001>
module attributes {stable_mosaic.version = 11 : i64} {
  func.func @_side_mid_fused_kernel(%arg0: i32, %arg1: memref<28x1024xf32, #tpu.memory_space<vmem>>, %arg2: memref<32x28xf32, #tpu.memory_space<vmem>>, %arg3: memref<4x1024xf32, #tpu.memory_space<vmem>>, %arg4: memref<32x2xf32, #tpu.memory_space<vmem>>, %arg5: memref<32x2xf32, #tpu.memory_space<vmem>>, %arg6: memref<1x2xf32, #tpu.memory_space<vmem>>, %arg7: memref<8x128xf32, #tpu.memory_space<vmem>>) attributes {dimension_semantics = [#tpu.dimension_semantics<arbitrary>], iteration_bounds = array<i64: 1>, scalar_prefetch = 0 : i64, scratch_operands = 0 : i64, tpu.core_type = #tpu.core_type<tc>, window_params = [{pipeline_mode = #tpu.pipeline_mode<synchronous>, transform_indices = @transform_0, window_bounds = array<i64: 28, 1024>}, {pipeline_mode = #tpu.pipeline_mode<synchronous>, transform_indices = @transform_1, window_bounds = array<i64: 32, 28>}, {pipeline_mode = #tpu.pipeline_mode<synchronous>, transform_indices = @transform_2, window_bounds = array<i64: 4, 1024>}, {pipeline_mode = #tpu.pipeline_mode<synchronous>, transform_indices = @transform_3, window_bounds = array<i64: 32, 2>}, {pipeline_mode = #tpu.pipeline_mode<synchronous>, transform_indices = @transform_4, window_bounds = array<i64: 32, 2>}, {pipeline_mode = #tpu.pipeline_mode<synchronous>, transform_indices = @transform_5, window_bounds = array<i64: 1, 2>}, {pipeline_mode = #tpu.pipeline_mode<synchronous>, transform_indices = @transform_6, window_bounds = array<i64: 8, 128>}]} {
    %c0 = arith.constant 0 : index
    %c0_0 = arith.constant 0 : index
    %0 = vector.load %arg2[%c0, %c0_0] : memref<32x28xf32, #tpu.memory_space<vmem>>, vector<32x28xf32>
    %c0_1 = arith.constant 0 : index
    %c0_2 = arith.constant 0 : index
    %1 = vector.load %arg1[%c0_1, %c0_2] : memref<28x1024xf32, #tpu.memory_space<vmem>>, vector<28x1024xf32>
    %cst = arith.constant dense<0.000000e+00> : vector<32x1024xf32>
    %2 = tpu.matmul %0, %1, %cst {dimension_numbers = #tpu.dot_dimension_numbers<[1], [0], [0], [1], [0, 0, 1, 1], [], []>} : vector<32x28xf32>, vector<28x1024xf32>, vector<32x1024xf32> -> vector<32x1024xf32>
    %cst_3 = arith.constant 0.000000e+00 : f32
    %3 = vector.broadcast %cst_3 : f32 to vector<32x1024xf32>
    %4 = arith.maximumf %2, %3 : vector<32x1024xf32>
    %c0_4 = arith.constant 0 : index
    %c0_5 = arith.constant 0 : index
    %5 = vector.load %arg3[%c0_4, %c0_5] : memref<4x1024xf32, #tpu.memory_space<vmem>>, vector<4x1024xf32>
    "tpu.trace_start"() <{level = 10 : i32, message = "nl,cl->nc"}> : () -> ()
    %cst_6 = arith.constant dense<0.000000e+00> : vector<4x32xf32>
    %6 = tpu.matmul %5, %4, %cst_6 {dimension_numbers = #tpu.dot_dimension_numbers<[1], [1], [0], [0], [0, 0, 1, 0], [], []>} : vector<4x1024xf32>, vector<32x1024xf32>, vector<4x32xf32> -> vector<4x32xf32>
    "tpu.trace_stop"() : () -> ()
    %7 = vector.extract_strided_slice %6 {offsets = [0, 0], sizes = [2, 32], strides = [1, 1]} : vector<4x32xf32> to vector<2x32xf32>
    %c0_7 = arith.constant 0 : index
    %c0_8 = arith.constant 0 : index
    %8 = vector.load %arg4[%c0_7, %c0_8] : memref<32x2xf32, #tpu.memory_space<vmem>>, vector<32x2xf32>
    %cst_9 = arith.constant dense<0.000000e+00> : vector<2x2xf32>
    %9 = tpu.matmul %7, %8, %cst_9 {dimension_numbers = #tpu.dot_dimension_numbers<[1], [0], [0], [1], [0, 0, 1, 1], [], []>} : vector<2x32xf32>, vector<32x2xf32>, vector<2x2xf32> -> vector<2x2xf32>
    %10 = vector.extract_strided_slice %6 {offsets = [2, 0], sizes = [2, 32], strides = [1, 1]} : vector<4x32xf32> to vector<2x32xf32>
    %c0_10 = arith.constant 0 : index
    %c0_11 = arith.constant 0 : index
    %11 = vector.load %arg5[%c0_10, %c0_11] : memref<32x2xf32, #tpu.memory_space<vmem>>, vector<32x2xf32>
    %cst_12 = arith.constant dense<0.000000e+00> : vector<2x2xf32>
    %12 = tpu.matmul %10, %11, %cst_12 {dimension_numbers = #tpu.dot_dimension_numbers<[1], [0], [0], [1], [0, 0, 1, 1], [], []>} : vector<2x32xf32>, vector<32x2xf32>, vector<2x2xf32> -> vector<2x2xf32>
    %13 = arith.addf %9, %12 : vector<2x2xf32>
    %c0_13 = arith.constant 0 : index
    %c0_14 = arith.constant 0 : index
    %14 = vector.load %arg6[%c0_13, %c0_14] : memref<1x2xf32, #tpu.memory_space<vmem>>, vector<1x2xf32>
    %15 = vector.broadcast %14 : vector<1x2xf32> to vector<2x2xf32>
    %16 = arith.addf %13, %15 : vector<2x2xf32>
    %cst_15 = arith.constant 0.000000e+00 : f32
    %17 = vector.broadcast %cst_15 : f32 to vector<8x128xf32>
    %c0_16 = arith.constant 0 : index
    %c0_17 = arith.constant 0 : index
    %18 = vector.load %arg7[%c0_16, %c0_17] : memref<8x128xf32, #tpu.memory_space<vmem>>, vector<8x128xf32>
    tpu.vector_store %arg7[%c0_16, %c0_17], %17 {strides = array<i32>} : memref<8x128xf32, #tpu.memory_space<vmem>>, vector<8x128xf32>,
    %c0_18 = arith.constant 0 : index
    %c0_19 = arith.constant 0 : index
    %19 = vector.load %arg7[%c0_18, %c0_19] : memref<8x128xf32, #tpu.memory_space<vmem>>, vector<2x2xf32>
    tpu.vector_store %arg7[%c0_18, %c0_19], %16 {strides = array<i32>} : memref<8x128xf32, #tpu.memory_space<vmem>>, vector<2x2xf32>,
    return
  }
  func.func @transform_0(%arg0: i32) -> (i32, i32) {
    %c0_i32 = arith.constant 0 : i32
    %c0_i32_0 = arith.constant 0 : i32
    %c0_i32_1 = arith.constant 0 : i32
    return %c0_i32, %c0_i32_0 : i32, i32
  }
  func.func @transform_1(%arg0: i32) -> (i32, i32) {
    %c0_i32 = arith.constant 0 : i32
    %c0_i32_0 = arith.constant 0 : i32
    %c0_i32_1 = arith.constant 0 : i32
    return %c0_i32, %c0_i32_0 : i32, i32
  }
  func.func @transform_2(%arg0: i32) -> (i32, i32) {
    %c0_i32 = arith.constant 0 : i32
    %c0_i32_0 = arith.constant 0 : i32
    %c0_i32_1 = arith.constant 0 : i32
    return %c0_i32, %c0_i32_0 : i32, i32
  }
  func.func @transform_3(%arg0: i32) -> (i32, i32) {
    %c0_i32 = arith.constant 0 : i32
    %c0_i32_0 = arith.constant 0 : i32
    %c0_i32_1 = arith.constant 0 : i32
    return %c0_i32, %c0_i32_0 : i32, i32
  }
  func.func @transform_4(%arg0: i32) -> (i32, i32) {
    %c0_i32 = arith.constant 0 : i32
    %c0_i32_0 = arith.constant 0 : i32
    %c0_i32_1 = arith.constant 0 : i32
    return %c0_i32, %c0_i32_0 : i32, i32
  }
  func.func @transform_5(%arg0: i32) -> (i32, i32) {
    %c0_i32 = arith.constant 0 : i32
    %c0_i32_0 = arith.constant 0 : i32
    %c0_i32_1 = arith.constant 0 : i32
    return %c0_i32, %c0_i32_0 : i32, i32
  }
  func.func @transform_6(%arg0: i32) -> (i32, i32) {
    %c0_i32 = arith.constant 0 : i32
    %c0_i32_0 = arith.constant 0 : i32
    %c0_i32_1 = arith.constant 0 : i32
    return %c0_i32, %c0_i32_0 : i32, i32
  }
}

</mosaic_0001>

<llo_original>
// kernel: tpu_custom_call.1
$region0: #{tpu_custom_call.1}
  #allocation0 [shape = 'u32[]', space=smem, size = 0x4, offset = 0x4, fixed_abs, tag = 'smem constant byte address 0x4 - core index']
  #allocation1 [shape = 'u32[72,128]{1,0:T(1,128)}', space=vmem, size = 0x9000, scoped, tag = 'internal scratch']
  %s0 = inlined_call_operand.hbm [shape: f32[28,1024], index: 0, kind: input, shape index: {}]
  %s1 = inlined_call_operand.vmem [shape: f32[32,28], index: 1, kind: input, shape index: {}]
  %s2 = inlined_call_operand.vmem [shape: f32[4,1024], index: 2, kind: input, shape index: {}]
  %s3 = inlined_call_operand.vmem [shape: f32[32,2], index: 3, kind: input, shape index: {}]
  %s4 = inlined_call_operand.vmem [shape: f32[32,2], index: 4, kind: input, shape index: {}]
  %s5 = inlined_call_operand.vmem [shape: f32[1,2], index: 5, kind: input, shape index: {}]
  %s6 = inlined_call_operand.hbm [shape: f32[8,128], index: 6, kind: output, shape index: {}]
  %s7 = sld [smem:[#allocation0]]
  $region38: #{tpu_custom_call.1} parent=0
    _
  %s9 = ssub.s32 1, %s7
  %s10 = scalar_select 0, %s9, %s7
  $region1: #{tpu_custom_call.1} parent=0
    #allocation2 [shape = 'u8[131072]{0}', space=vmem, size = 0x20000, scoped, tag = 'input window, operand 0, single buffered']
    #allocation3 [shape = 's32[1]{0}', space=sflag, size = 0x4, scoped, tag = 'scoped memory for tpu_custom_call.1']
    #allocation4 [shape = 's32[1]{0}', space=sflag, size = 0x4, scoped, tag = 'scoped memory for tpu_custom_call.1']
    #allocation5 [shape = 'u8[4096]{0}', space=vmem, size = 0x1000, scoped, tag = 'output window, operand 0, single buffered']
    %11 = vsyncpa [#allocation3], 0
    %12 = vsyncpa [#allocation4], 0
    // Predicated region
    $region2: #{tpu_custom_call.1} parent=1 // pred_check
      _
    $region3: #{tpu_custom_call.1} parent=1 // pred_check_branch
      %14 = sbr.rel (0) target = $region5
    $region4: #{tpu_custom_call.1} parent=1 // pred_region
      %16 = vsyncadd [#allocation3], 0
      %s17 = sshll.u32 %s0, 4
      %s18 = int_to_ptr.hbm [resolvable:$true] %s17
      %s19 = sshll.u32 [#allocation2], 4
      %s20 = int_to_ptr.vmem [resolvable:$true] %s19
      %25 = dma.hbm_to_vmem [thread:$0]  %s18, 4096, %s20, [#allocation3], 1024, 1024, 64
    $region5: #{tpu_custom_call.1} parent=1 // pred_fallthru
      _
    // Predicated region
    $region6: #{tpu_custom_call.1} parent=1 // pred_check
      _
    $region7: #{tpu_custom_call.1} parent=1 // pred_check_branch
      %27 = sbr.rel (0) target = $region9
    $region8: #{tpu_custom_call.1} parent=1 // pred_region
      _
    $region9: #{tpu_custom_call.1} parent=1 // pred_fallthru
      _
    // Predicated region
    $region10: #{tpu_custom_call.1} parent=1 // pred_check
      _
    $region11: #{tpu_custom_call.1} parent=1 // pred_check_branch
      %29 = sbr.rel (0) target = $region13
    $region12: #{tpu_custom_call.1} parent=1 // pred_region
      _
    $region13: #{tpu_custom_call.1} parent=1 // pred_fallthru
      _
    // Predicated region
    $region14: #{tpu_custom_call.1} parent=1 // pred_check
      _
    $region15: #{tpu_custom_call.1} parent=1 // pred_check_branch
      %31 = sbr.rel (0) target = $region17
    $region16: #{tpu_custom_call.1} parent=1 // pred_region
      _
    $region17: #{tpu_custom_call.1} parent=1 // pred_fallthru
      _
    // Predicated region
    $region18: #{tpu_custom_call.1} parent=1 // pred_check
      _
    $region19: #{tpu_custom_call.1} parent=1 // pred_check_branch
      %33 = sbr.rel (0) target = $region21
    $region20: #{tpu_custom_call.1} parent=1 // pred_region
      _
    $region21: #{tpu_custom_call.1} parent=1 // pred_fallthru
      _
    // Predicated region
    $region22: #{tpu_custom_call.1} parent=1 // pred_check
      _
    $region23: #{tpu_custom_call.1} parent=1 // pred_check_branch
      %35 = sbr.rel (0) target = $region25
    $region24: #{tpu_custom_call.1} parent=1 // pred_region
      _
    $region25: #{tpu_custom_call.1} parent=1 // pred_fallthru
      _
    // Predicated region
    $region26: #{tpu_custom_call.1} parent=1 // pred_check
      _
    $region27: #{tpu_custom_call.1} parent=1 // pred_check_branch
      %37 = sbr.rel (0) target = $region29
    $region28: #{tpu_custom_call.1} parent=1 // pred_region
      %39 = dma.done [#allocation3], 4096
    $region29: #{tpu_custom_call.1} parent=1 // pred_fallthru
      _
    %v40 = vld [vmem:[%s1] sm:$0xff]
    %v41 = vld [vmem:[%s1 + $0x8] sm:$0xff]
    %v42 = vld [vmem:[%s1 + $0x10] sm:$0xff]
    %v43 = vld [vmem:[%s1 + $0x18] sm:$0xff]
    %v44 = vld [vmem:[#allocation2] sm:$0xff]
    %v45 = vld [vmem:[#allocation2 + $0x8] sm:$0xff]
    %v46 = vld [vmem:[#allocation2 + $0x10] sm:$0xff]
    %v47 = vld [vmem:[#allocation2 + $0x18] sm:$0xff]
    %v48 = vld [vmem:[#allocation2 + $0x20] sm:$0xff]
    %v49 = vld [vmem:[#allocation2 + $0x28] sm:$0xff]
    %v50 = vld [vmem:[#allocation2 + $0x30] sm:$0xff]
    %v51 = vld [vmem:[#allocation2 + $0x38] sm:$0xff]
    %v52 = vld [vmem:[#allocation2 + $0x40] sm:$0xff]
    %v53 = vld [vmem:[#allocation2 + $0x48] sm:$0xff]
    %v54 = vld [vmem:[#allocation2 + $0x50] sm:$0xff]
    %v55 = vld [vmem:[#allocation2 + $0x58] sm:$0xff]
    %v56 = vld [vmem:[#allocation2 + $0x60] sm:$0xff]
    %v57 = vld [vmem:[#allocation2 + $0x68] sm:$0xff]
    %v58 = vld [vmem:[#allocation2 + $0x70] sm:$0xff]
    %v59 = vld [vmem:[#allocation2 + $0x78] sm:$0xff]
    %v60 = vld [vmem:[#allocation2 + $0x80] sm:$0xff]
    %v61 = vld [vmem:[#allocation2 + $0x88] sm:$0xff]
    %v62 = vld [vmem:[#allocation2 + $0x90] sm:$0xff]
    %v63 = vld [vmem:[#allocation2 + $0x98] sm:$0xff]
    %v64 = vld [vmem:[#allocation2 + $0xa0] sm:$0xff]
    %v65 = vld [vmem:[#allocation2 + $0xa8] sm:$0xff]
    %v66 = vld [vmem:[#allocation2 + $0xb0] sm:$0xff]
    %v67 = vld [vmem:[#allocation2 + $0xb8] sm:$0xff]
    %v68 = vld [vmem:[#allocation2 + $0xc0] sm:$0xf]
    %v69 = vld [vmem:[#allocation2 + $0xc8] sm:$0xf]
    %v70 = vld [vmem:[#allocation2 + $0xd0] sm:$0xf]
    %v71 = vld [vmem:[#allocation2 + $0xd8] sm:$0xf]
    %v72 = vld [vmem:[#allocation2 + $0xe0] sm:$0xf]
    %v73 = vld [vmem:[#allocation2 + $0xe8] sm:$0xf]
    %v74 = vld [vmem:[#allocation2 + $0xf0] sm:$0xf]
    %v75 = vld [vmem:[#allocation2 + $0xf8] sm:$0xf]
    %vm76 = vcmask 228352
    %v78 = vsel %vm76, %v40, 0
    %v81 = vsel %vm76, %v41, 0
    %v84 = vsel %vm76, %v42, 0
    %v87 = vsel %vm76, %v43, 0
    %vm89 = vcmask 1043456
    %v91 = vsel %vm89, %v68, 0
    %v94 = vsel %vm89, %v69, 0
    %v97 = vsel %vm89, %v70, 0
    %v100 = vsel %vm89, %v71, 0
    %v103 = vsel %vm89, %v72, 0
    %v106 = vsel %vm89, %v73, 0
    %v109 = vsel %vm89, %v74, 0
    %v112 = vsel %vm89, %v75, 0
    %114 = vmatpush.msra.mxu0 0.0
    %115 = vmatpush.msra.mxu0 0.0
    %116 = vmatpush.msra.mxu0 0.0
    %117 = vmatpush.msra.mxu0 0.0
    %118 = vmatpush.msra.mxu0 0.0
    %119 = vmatpush.msra.mxu0 0.0
    %120 = vmatpush.msra.mxu0 0.0
    %121 = vmatpush.msra.mxu0 0.0
    %122 = vmatpush.msra.mxu0 0.0
    %123 = vmatpush.msra.mxu0 0.0
    %124 = vmatpush.msra.mxu0 0.0
    %125 = vmatpush.msra.mxu0 0.0
    %126 = vmatpush.msra.mxu0 %v91
    %127 = vmatpush.msra.mxu0 %v60
    %128 = vmatpush.msra.mxu0 %v52
    %129 = vmatpush.msra.mxu0 %v44
    %130 = vmatmul.f32.gmra.mxu0 %v78
    %v131 = vpop.f32.mrf.mxu0
    %v132 = vadd.f32 0.0, %v131
    %133 = vmatmul.f32.gmra.mxu0 %v81
    %v134 = vpop.f32.mrf.mxu0
    %v135 = vadd.f32 0.0, %v134
    %136 = vmatmul.f32.gmra.mxu0 %v84
    %v137 = vpop.f32.mrf.mxu0
    %v138 = vadd.f32 0.0, %v137
    %139 = vmatmul.f32.gmra.mxu0 %v87
    %v140 = vpop.f32.mrf.mxu0
    %v141 = vadd.f32 0.0, %v140
    %142 = vdwg.mxu0
    %143 = vmatpush.msra.mxu0 0.0
    %144 = vmatpush.msra.mxu0 0.0
    %145 = vmatpush.msra.mxu0 0.0
    %146 = vmatpush.msra.mxu0 0.0
    %147 = vmatpush.msra.mxu0 0.0
    %148 = vmatpush.msra.mxu0 0.0
    %149 = vmatpush.msra.mxu0 0.0
    %150 = vmatpush.msra.mxu0 0.0
    %151 = vmatpush.msra.mxu0 0.0
    %152 = vmatpush.msra.mxu0 0.0
    %153 = vmatpush.msra.mxu0 0.0
    %154 = vmatpush.msra.mxu0 0.0
    %155 = vmatpush.msra.mxu0 %v94
    %156 = vmatpush.msra.mxu0 %v61
    %157 = vmatpush.msra.mxu0 %v53
    %158 = vmatpush.msra.mxu0 %v45
    %159 = vmatmul.f32.gmra.mxu0 %v78
    %v160 = vpop.f32.mrf.mxu0
    %v161 = vadd.f32 0.0, %v160
    %162 = vmatmul.f32.gmra.mxu0 %v81
    %v163 = vpop.f32.mrf.mxu0
    %v164 = vadd.f32 0.0, %v163
    %165 = vmatmul.f32.gmra.mxu0 %v84
    %v166 = vpop.f32.mrf.mxu0
    %v167 = vadd.f32 0.0, %v166
    %168 = vmatmul.f32.gmra.mxu0 %v87
    %v169 = vpop.f32.mrf.mxu0
    %v170 = vadd.f32 0.0, %v169
    %171 = vdwg.mxu0
    %172 = vmatpush.msra.mxu0 0.0
    %173 = vmatpush.msra.mxu0 0.0
    %174 = vmatpush.msra.mxu0 0.0
    %175 = vmatpush.msra.mxu0 0.0
    %176 = vmatpush.msra.mxu0 0.0
    %177 = vmatpush.msra.mxu0 0.0
    %178 = vmatpush.msra.mxu0 0.0
    %179 = vmatpush.msra.mxu0 0.0
    %180 = vmatpush.msra.mxu0 0.0
    %181 = vmatpush.msra.mxu0 0.0
    %182 = vmatpush.msra.mxu0 0.0
    %183 = vmatpush.msra.mxu0 0.0
    %184 = vmatpush.msra.mxu0 %v97
    %185 = vmatpush.msra.mxu0 %v62
    %186 = vmatpush.msra.mxu0 %v54
    %187 = vmatpush.msra.mxu0 %v46
    %188 = vmatmul.f32.gmra.mxu0 %v78
    %v189 = vpop.f32.mrf.mxu0
    %v190 = vadd.f32 0.0, %v189
    %191 = vmatmul.f32.gmra.mxu0 %v81
    %v192 = vpop.f32.mrf.mxu0
    %v193 = vadd.f32 0.0, %v192
    %194 = vmatmul.f32.gmra.mxu0 %v84
    %v195 = vpop.f32.mrf.mxu0
    %v196 = vadd.f32 0.0, %v195
    %197 = vmatmul.f32.gmra.mxu0 %v87
    %v198 = vpop.f32.mrf.mxu0
    %v199 = vadd.f32 0.0, %v198
    %200 = vdwg.mxu0
    %201 = vmatpush.msra.mxu0 0.0
    %202 = vmatpush.msra.mxu0 0.0
    %203 = vmatpush.msra.mxu0 0.0
    %204 = vmatpush.msra.mxu0 0.0
    %205 = vmatpush.msra.mxu0 0.0
    %206 = vmatpush.msra.mxu0 0.0
    %207 = vmatpush.msra.mxu0 0.0
    %208 = vmatpush.msra.mxu0 0.0
    %209 = vmatpush.msra.mxu0 0.0
    %210 = vmatpush.msra.mxu0 0.0
    %211 = vmatpush.msra.mxu0 0.0
    %212 = vmatpush.msra.mxu0 0.0
    %213 = vmatpush.msra.mxu0 %v100
    %214 = vmatpush.msra.mxu0 %v63
    %215 = vmatpush.msra.mxu0 %v55
    %216 = vmatpush.msra.mxu0 %v47
    %217 = vmatmul.f32.gmra.mxu0 %v78
    %v218 = vpop.f32.mrf.mxu0
    %v219 = vadd.f32 0.0, %v218
    %220 = vmatmul.f32.gmra.mxu0 %v81
    %v221 = vpop.f32.mrf.mxu0
    %v222 = vadd.f32 0.0, %v221
    %223 = vmatmul.f32.gmra.mxu0 %v84
    %v224 = vpop.f32.mrf.mxu0
    %v225 = vadd.f32 0.0, %v224
    %226 = vmatmul.f32.gmra.mxu0 %v87
    %v227 = vpop.f32.mrf.mxu0
    %v228 = vadd.f32 0.0, %v227
    %229 = vdwg.mxu0
    %230 = vmatpush.msra.mxu0 0.0
    %231 = vmatpush.msra.mxu0 0.0
    %232 = vmatpush.msra.mxu0 0.0
    %233 = vmatpush.msra.mxu0 0.0
    %234 = vmatpush.msra.mxu0 0.0
    %235 = vmatpush.msra.mxu0 0.0
    %236 = vmatpush.msra.mxu0 0.0
    %237 = vmatpush.msra.mxu0 0.0
    %238 = vmatpush.msra.mxu0 0.0
    %239 = vmatpush.msra.mxu0 0.0
    %240 = vmatpush.msra.mxu0 0.0
    %241 = vmatpush.msra.mxu0 0.0
    %242 = vmatpush.msra.mxu0 %v103
    %243 = vmatpush.msra.mxu0 %v64
    %244 = vmatpush.msra.mxu0 %v56
    %245 = vmatpush.msra.mxu0 %v48
    %246 = vmatmul.f32.gmra.mxu0 %v78
    %v247 = vpop.f32.mrf.mxu0
    %v248 = vadd.f32 0.0, %v247
    %249 = vmatmul.f32.gmra.mxu0 %v81
    %v250 = vpop.f32.mrf.mxu0
    %v251 = vadd.f32 0.0, %v250
    %252 = vmatmul.f32.gmra.mxu0 %v84
    %v253 = vpop.f32.mrf.mxu0
    %v254 = vadd.f32 0.0, %v253
    %255 = vmatmul.f32.gmra.mxu0 %v87
    %v256 = vpop.f32.mrf.mxu0
    %v257 = vadd.f32 0.0, %v256
    %258 = vdwg.mxu0
    %259 = vmatpush.msra.mxu0 0.0
    %260 = vmatpush.msra.mxu0 0.0
    %261 = vmatpush.msra.mxu0 0.0
    %262 = vmatpush.msra.mxu0 0.0
    %263 = vmatpush.msra.mxu0 0.0
    %264 = vmatpush.msra.mxu0 0.0
    %265 = vmatpush.msra.mxu0 0.0
    %266 = vmatpush.msra.mxu0 0.0
    %267 = vmatpush.msra.mxu0 0.0
    %268 = vmatpush.msra.mxu0 0.0
    %269 = vmatpush.msra.mxu0 0.0
    %270 = vmatpush.msra.mxu0 0.0
    %271 = vmatpush.msra.mxu0 %v106
    %272 = vmatpush.msra.mxu0 %v65
    %273 = vmatpush.msra.mxu0 %v57
    %274 = vmatpush.msra.mxu0 %v49
    %275 = vmatmul.f32.gmra.mxu0 %v78
    %v276 = vpop.f32.mrf.mxu0
    %v277 = vadd.f32 0.0, %v276
    %278 = vmatmul.f32.gmra.mxu0 %v81
    %v279 = vpop.f32.mrf.mxu0
    %v280 = vadd.f32 0.0, %v279
    %281 = vmatmul.f32.gmra.mxu0 %v84
    %v282 = vpop.f32.mrf.mxu0
    %v283 = vadd.f32 0.0, %v282
    %284 = vmatmul.f32.gmra.mxu0 %v87
    %v285 = vpop.f32.mrf.mxu0
    %v286 = vadd.f32 0.0, %v285
    %287 = vdwg.mxu0
    %288 = vmatpush.msra.mxu0 0.0
    %289 = vmatpush.msra.mxu0 0.0
    %290 = vmatpush.msra.mxu0 0.0
    %291 = vmatpush.msra.mxu0 0.0
    %292 = vmatpush.msra.mxu0 0.0
    %293 = vmatpush.msra.mxu0 0.0
    %294 = vmatpush.msra.mxu0 0.0
    %295 = vmatpush.msra.mxu0 0.0
    %296 = vmatpush.msra.mxu0 0.0
    %297 = vmatpush.msra.mxu0 0.0
    %298 = vmatpush.msra.mxu0 0.0
    %299 = vmatpush.msra.mxu0 0.0
    %300 = vmatpush.msra.mxu0 %v109
    %301 = vmatpush.msra.mxu0 %v66
    %302 = vmatpush.msra.mxu0 %v58
    %303 = vmatpush.msra.mxu0 %v50
    %304 = vmatmul.f32.gmra.mxu0 %v78
    %v305 = vpop.f32.mrf.mxu0
    %v306 = vadd.f32 0.0, %v305
    %307 = vmatmul.f32.gmra.mxu0 %v81
    %v308 = vpop.f32.mrf.mxu0
    %v309 = vadd.f32 0.0, %v308
    %310 = vmatmul.f32.gmra.mxu0 %v84
    %v311 = vpop.f32.mrf.mxu0
    %v312 = vadd.f32 0.0, %v311
    %313 = vmatmul.f32.gmra.mxu0 %v87
    %v314 = vpop.f32.mrf.mxu0
    %v315 = vadd.f32 0.0, %v314
    %316 = vdwg.mxu0
    %317 = vmatpush.msra.mxu0 0.0
    %318 = vmatpush.msra.mxu0 0.0
    %319 = vmatpush.msra.mxu0 0.0
    %320 = vmatpush.msra.mxu0 0.0
    %321 = vmatpush.msra.mxu0 0.0
    %322 = vmatpush.msra.mxu0 0.0
    %323 = vmatpush.msra.mxu0 0.0
    %324 = vmatpush.msra.mxu0 0.0
    %325 = vmatpush.msra.mxu0 0.0
    %326 = vmatpush.msra.mxu0 0.0
    %327 = vmatpush.msra.mxu0 0.0
    %328 = vmatpush.msra.mxu0 0.0
    %329 = vmatpush.msra.mxu0 %v112
    %330 = vmatpush.msra.mxu0 %v67
    %331 = vmatpush.msra.mxu0 %v59
    %332 = vmatpush.msra.mxu0 %v51
    %333 = vmatmul.f32.gmra.mxu0 %v78
    %v334 = vpop.f32.mrf.mxu0
    %v335 = vadd.f32 0.0, %v334
    %336 = vmatmul.f32.gmra.mxu0 %v81
    %v337 = vpop.f32.mrf.mxu0
    %v338 = vadd.f32 0.0, %v337
    %339 = vmatmul.f32.gmra.mxu0 %v84
    %v340 = vpop.f32.mrf.mxu0
    %v341 = vadd.f32 0.0, %v340
    %342 = vmatmul.f32.gmra.mxu0 %v87
    %v343 = vpop.f32.mrf.mxu0
    %v344 = vadd.f32 0.0, %v343
    %345 = vdwg.mxu0
    %v346 = vmax.f32 %v132, 0.0
    %v347 = vmax.f32 %v161, 0.0
    %v348 = vmax.f32 %v190, 0.0
    %v349 = vmax.f32 %v219, 0.0
    %v350 = vmax.f32 %v248, 0.0
    %v351 = vmax.f32 %v277, 0.0
    %v352 = vmax.f32 %v306, 0.0
    %v353 = vmax.f32 %v335, 0.0
    %v354 = vmax.f32 %v135, 0.0
    %v355 = vmax.f32 %v164, 0.0
    %v356 = vmax.f32 %v193, 0.0
    %v357 = vmax.f32 %v222, 0.0
    %v358 = vmax.f32 %v251, 0.0
    %v359 = vmax.f32 %v280, 0.0
    %v360 = vmax.f32 %v309, 0.0
    %v361 = vmax.f32 %v338, 0.0
    %v362 = vmax.f32 %v138, 0.0
    %v363 = vmax.f32 %v167, 0.0
    %v364 = vmax.f32 %v196, 0.0
    %v365 = vmax.f32 %v225, 0.0
    %v366 = vmax.f32 %v254, 0.0
    %v367 = vmax.f32 %v283, 0.0
    %v368 = vmax.f32 %v312, 0.0
    %v369 = vmax.f32 %v341, 0.0
    %v370 = vmax.f32 %v141, 0.0
    %v371 = vmax.f32 %v170, 0.0
    %v372 = vmax.f32 %v199, 0.0
    %v373 = vmax.f32 %v228, 0.0
    %v374 = vmax.f32 %v257, 0.0
    %v375 = vmax.f32 %v286, 0.0
    %v376 = vmax.f32 %v315, 0.0
    %v377 = vmax.f32 %v344, 0.0
    %v378 = vld [vmem:[%s2] sm:$0xff]
    %v379 = vld [vmem:[%s2 + $0x8] sm:$0xff]
    %v380 = vld [vmem:[%s2 + $0x10] sm:$0xff]
    %v381 = vld [vmem:[%s2 + $0x18] sm:$0xff]
    %386 = vst [vmem:[#allocation1] ss:$2 sm:$0xff] %v378
    %s387 = scalar_lea.vmem [#allocation1], 16
    %388 = vst [vmem:[%s387] ss:$2 sm:$0xff] %v379
    %s389 = scalar_lea.vmem [#allocation1], 32
    %390 = vst [vmem:[%s389] ss:$2 sm:$0xff] %v380
    %s391 = scalar_lea.vmem [#allocation1], 48
    %392 = vst [vmem:[%s391] ss:$2 sm:$0xff] %v381
    %v393 = vld.sshfl [vmem:[#allocation1] sm:$0xff pattern:$0x75316420]
    %v394 = vld.sshfl [vmem:[#allocation1 + $0x8] sm:$0xff pattern:$0x75316420]
    %v395 = vld.sshfl [vmem:[#allocation1 + $0x10] sm:$0xff pattern:$0x75316420]
    %v396 = vld.sshfl [vmem:[#allocation1 + $0x18] sm:$0xff pattern:$0x75316420]
    %v397 = vld.sshfl [vmem:[#allocation1 + $0x20] sm:$0xff pattern:$0x75316420]
    %v398 = vld.sshfl [vmem:[#allocation1 + $0x28] sm:$0xff pattern:$0x75316420]
    %v399 = vld.sshfl [vmem:[#allocation1 + $0x30] sm:$0xff pattern:$0x75316420]
    %v400 = vld.sshfl [vmem:[#allocation1 + $0x38] sm:$0xff pattern:$0x75316420]
    %409 = vmatpush.xpose.msra.mxu0 0.0
    %410 = vmatpush.xpose.msra.mxu0 0.0
    %411 = vmatpush.xpose.msra.mxu0 0.0
    %412 = vmatpush.xpose.msra.mxu0 0.0
    %413 = vmatpush.xpose.msra.mxu0 0.0
    %414 = vmatpush.xpose.msra.mxu0 0.0
    %415 = vmatpush.xpose.msra.mxu0 0.0
    %416 = vmatpush.xpose.msra.mxu0 0.0
    %417 = vmatpush.xpose.msra.mxu0 0.0
    %418 = vmatpush.xpose.msra.mxu0 0.0
    %419 = vmatpush.xpose.msra.mxu0 0.0
    %420 = vmatpush.xpose.msra.mxu0 0.0
    %421 = vmatpush.xpose.msra.mxu0 %v370
    %422 = vmatpush.xpose.msra.mxu0 %v362
    %423 = vmatpush.xpose.msra.mxu0 %v354
    %424 = vmatpush.xpose.msra.mxu0 %v346
    %425 = vmatmul.f32.gmra.mxu0 %v393
    %v426 = vpop.f32.mrf.mxu0
    %v427 = vadd.f32 0.0, %v426
    %428 = vdwg.mxu0
    %429 = vmatpush.xpose.msra.mxu0 0.0
    %430 = vmatpush.xpose.msra.mxu0 0.0
    %431 = vmatpush.xpose.msra.mxu0 0.0
    %432 = vmatpush.xpose.msra.mxu0 0.0
    %433 = vmatpush.xpose.msra.mxu0 0.0
    %434 = vmatpush.xpose.msra.mxu0 0.0
    %435 = vmatpush.xpose.msra.mxu0 0.0
    %436 = vmatpush.xpose.msra.mxu0 0.0
    %437 = vmatpush.xpose.msra.mxu0 0.0
    %438 = vmatpush.xpose.msra.mxu0 0.0
    %439 = vmatpush.xpose.msra.mxu0 0.0
    %440 = vmatpush.xpose.msra.mxu0 0.0
    %441 = vmatpush.xpose.msra.mxu0 %v371
    %442 = vmatpush.xpose.msra.mxu0 %v363
    %443 = vmatpush.xpose.msra.mxu0 %v355
    %444 = vmatpush.xpose.msra.mxu0 %v347
    %445 = vmatmul.f32.gmra.mxu0 %v394
    %v446 = vpop.f32.mrf.mxu0
    %v447 = vadd.f32 %v427, %v446
    %448 = vdwg.mxu0
    %449 = vmatpush.xpose.msra.mxu0 0.0
    %450 = vmatpush.xpose.msra.mxu0 0.0
    %451 = vmatpush.xpose.msra.mxu0 0.0
    %452 = vmatpush.xpose.msra.mxu0 0.0
    %453 = vmatpush.xpose.msra.mxu0 0.0
    %454 = vmatpush.xpose.msra.mxu0 0.0
    %455 = vmatpush.xpose.msra.mxu0 0.0
    %456 = vmatpush.xpose.msra.mxu0 0.0
    %457 = vmatpush.xpose.msra.mxu0 0.0
    %458 = vmatpush.xpose.msra.mxu0 0.0
    %459 = vmatpush.xpose.msra.mxu0 0.0
    %460 = vmatpush.xpose.msra.mxu0 0.0
    %461 = vmatpush.xpose.msra.mxu0 %v372
    %462 = vmatpush.xpose.msra.mxu0 %v364
    %463 = vmatpush.xpose.msra.mxu0 %v356
    %464 = vmatpush.xpose.msra.mxu0 %v348
    %465 = vmatmul.f32.gmra.mxu0 %v395
    %v466 = vpop.f32.mrf.mxu0
    %v467 = vadd.f32 %v447, %v466
    %468 = vdwg.mxu0
    %469 = vmatpush.xpose.msra.mxu0 0.0
    %470 = vmatpush.xpose.msra.mxu0 0.0
    %471 = vmatpush.xpose.msra.mxu0 0.0
    %472 = vmatpush.xpose.msra.mxu0 0.0
    %473 = vmatpush.xpose.msra.mxu0 0.0
    %474 = vmatpush.xpose.msra.mxu0 0.0
    %475 = vmatpush.xpose.msra.mxu0 0.0
    %476 = vmatpush.xpose.msra.mxu0 0.0
    %477 = vmatpush.xpose.msra.mxu0 0.0
    %478 = vmatpush.xpose.msra.mxu0 0.0
    %479 = vmatpush.xpose.msra.mxu0 0.0
    %480 = vmatpush.xpose.msra.mxu0 0.0
    %481 = vmatpush.xpose.msra.mxu0 %v373
    %482 = vmatpush.xpose.msra.mxu0 %v365
    %483 = vmatpush.xpose.msra.mxu0 %v357
    %484 = vmatpush.xpose.msra.mxu0 %v349
    %485 = vmatmul.f32.gmra.mxu0 %v396
    %v486 = vpop.f32.mrf.mxu0
    %v487 = vadd.f32 %v467, %v486
    %488 = vdwg.mxu0
    %489 = vmatpush.xpose.msra.mxu0 0.0
    %490 = vmatpush.xpose.msra.mxu0 0.0
    %491 = vmatpush.xpose.msra.mxu0 0.0
    %492 = vmatpush.xpose.msra.mxu0 0.0
    %493 = vmatpush.xpose.msra.mxu0 0.0
    %494 = vmatpush.xpose.msra.mxu0 0.0
    %495 = vmatpush.xpose.msra.mxu0 0.0
    %496 = vmatpush.xpose.msra.mxu0 0.0
    %497 = vmatpush.xpose.msra.mxu0 0.0
    %498 = vmatpush.xpose.msra.mxu0 0.0
    %499 = vmatpush.xpose.msra.mxu0 0.0
    %500 = vmatpush.xpose.msra.mxu0 0.0
    %501 = vmatpush.xpose.msra.mxu0 %v374
    %502 = vmatpush.xpose.msra.mxu0 %v366
    %503 = vmatpush.xpose.msra.mxu0 %v358
    %504 = vmatpush.xpose.msra.mxu0 %v350
    %505 = vmatmul.f32.gmra.mxu0 %v397
    %v506 = vpop.f32.mrf.mxu0
    %v507 = vadd.f32 %v487, %v506
    %508 = vdwg.mxu0
    %509 = vmatpush.xpose.msra.mxu0 0.0
    %510 = vmatpush.xpose.msra.mxu0 0.0
    %511 = vmatpush.xpose.msra.mxu0 0.0
    %512 = vmatpush.xpose.msra.mxu0 0.0
    %513 = vmatpush.xpose.msra.mxu0 0.0
    %514 = vmatpush.xpose.msra.mxu0 0.0
    %515 = vmatpush.xpose.msra.mxu0 0.0
    %516 = vmatpush.xpose.msra.mxu0 0.0
    %517 = vmatpush.xpose.msra.mxu0 0.0
    %518 = vmatpush.xpose.msra.mxu0 0.0
    %519 = vmatpush.xpose.msra.mxu0 0.0
    %520 = vmatpush.xpose.msra.mxu0 0.0
    %521 = vmatpush.xpose.msra.mxu0 %v375
    %522 = vmatpush.xpose.msra.mxu0 %v367
    %523 = vmatpush.xpose.msra.mxu0 %v359
    %524 = vmatpush.xpose.msra.mxu0 %v351
    %525 = vmatmul.f32.gmra.mxu0 %v398
    %v526 = vpop.f32.mrf.mxu0
    %v527 = vadd.f32 %v507, %v526
    %528 = vdwg.mxu0
    %529 = vmatpush.xpose.msra.mxu0 0.0
    %530 = vmatpush.xpose.msra.mxu0 0.0
    %531 = vmatpush.xpose.msra.mxu0 0.0
    %532 = vmatpush.xpose.msra.mxu0 0.0
    %533 = vmatpush.xpose.msra.mxu0 0.0
    %534 = vmatpush.xpose.msra.mxu0 0.0
    %535 = vmatpush.xpose.msra.mxu0 0.0
    %536 = vmatpush.xpose.msra.mxu0 0.0
    %537 = vmatpush.xpose.msra.mxu0 0.0
    %538 = vmatpush.xpose.msra.mxu0 0.0
    %539 = vmatpush.xpose.msra.mxu0 0.0
    %540 = vmatpush.xpose.msra.mxu0 0.0
    %541 = vmatpush.xpose.msra.mxu0 %v376
    %542 = vmatpush.xpose.msra.mxu0 %v368
    %543 = vmatpush.xpose.msra.mxu0 %v360
    %544 = vmatpush.xpose.msra.mxu0 %v352
    %545 = vmatmul.f32.gmra.mxu0 %v399
    %v546 = vpop.f32.mrf.mxu0
    %v547 = vadd.f32 %v527, %v546
    %548 = vdwg.mxu0
    %549 = vmatpush.xpose.msra.mxu0 0.0
    %550 = vmatpush.xpose.msra.mxu0 0.0
    %551 = vmatpush.xpose.msra.mxu0 0.0
    %552 = vmatpush.xpose.msra.mxu0 0.0
    %553 = vmatpush.xpose.msra.mxu0 0.0
    %554 = vmatpush.xpose.msra.mxu0 0.0
    %555 = vmatpush.xpose.msra.mxu0 0.0
    %556 = vmatpush.xpose.msra.mxu0 0.0
    %557 = vmatpush.xpose.msra.mxu0 0.0
    %558 = vmatpush.xpose.msra.mxu0 0.0
    %559 = vmatpush.xpose.msra.mxu0 0.0
    %560 = vmatpush.xpose.msra.mxu0 0.0
    %561 = vmatpush.xpose.msra.mxu0 %v377
    %562 = vmatpush.xpose.msra.mxu0 %v369
    %563 = vmatpush.xpose.msra.mxu0 %v361
    %564 = vmatpush.xpose.msra.mxu0 %v353
    %565 = vmatmul.f32.gmra.mxu0 %v400
    %v566 = vpop.f32.mrf.mxu0
    %v567 = vadd.f32 %v547, %v566
    %568 = vdwg.mxu0
    %v569 = vld [vmem:[%s3] sm:$0xff]
    %v570 = vld [vmem:[%s3 + $0x8] sm:$0xff]
    %v571 = vld [vmem:[%s3 + $0x10] sm:$0xff]
    %v572 = vld [vmem:[%s3 + $0x18] sm:$0xff]
    %v573 = vld [vmem:[%s4] sm:$0xff]
    %v574 = vld [vmem:[%s4 + $0x8] sm:$0xff]
    %v575 = vld [vmem:[%s4 + $0x10] sm:$0xff]
    %v576 = vld [vmem:[%s4 + $0x18] sm:$0xff]
    %v578 = vrot.slane %v567, 2
    %vm579 = vcmask 261120
    %v580 = vsel %vm579, %v578, 0
    %582 = vmatpush.msra.mxu0 0.0
    %583 = vmatpush.msra.mxu0 0.0
    %584 = vmatpush.msra.mxu0 0.0
    %585 = vmatpush.msra.mxu0 0.0
    %586 = vmatpush.msra.mxu0 0.0
    %587 = vmatpush.msra.mxu0 0.0
    %588 = vmatpush.msra.mxu0 0.0
    %589 = vmatpush.msra.mxu0 0.0
    %590 = vmatpush.msra.mxu0 0.0
    %591 = vmatpush.msra.mxu0 0.0
    %592 = vmatpush.msra.mxu0 0.0
    %593 = vmatpush.msra.mxu0 0.0
    %594 = vmatpush.msra.mxu0 %v576
    %595 = vmatpush.msra.mxu0 %v575
    %596 = vmatpush.msra.mxu0 %v574
    %597 = vmatpush.msra.mxu0 %v573
    %598 = vmatmul.f32.gmra.mxu0 %v580
    %v599 = vpop.f32.mrf.mxu0
    %v600 = vadd.f32 0.0, %v599
    %601 = vdwg.mxu0
    %v602 = vsel %vm579, %v567, 0
    %604 = vmatpush.msra.mxu0 0.0
    %605 = vmatpush.msra.mxu0 0.0
    %606 = vmatpush.msra.mxu0 0.0
    %607 = vmatpush.msra.mxu0 0.0
    %608 = vmatpush.msra.mxu0 0.0
    %609 = vmatpush.msra.mxu0 0.0
    %610 = vmatpush.msra.mxu0 0.0
    %611 = vmatpush.msra.mxu0 0.0
    %612 = vmatpush.msra.mxu0 0.0
    %613 = vmatpush.msra.mxu0 0.0
    %614 = vmatpush.msra.mxu0 0.0
    %615 = vmatpush.msra.mxu0 0.0
    %616 = vmatpush.msra.mxu0 %v572
    %617 = vmatpush.msra.mxu0 %v571
    %618 = vmatpush.msra.mxu0 %v570
    %619 = vmatpush.msra.mxu0 %v569
    %620 = vmatmul.f32.gmra.mxu0 %v602
    %v621 = vpop.f32.mrf.mxu0
    %v622 = vadd.f32 %v600, %v621
    %623 = vdwg.mxu0
    %v624 = vld [vmem:[%s5] sm:$0x1]
    %v626 = vperm.slane %v624, 0
    %v628 = vadd.f32 %v622, %v626
    %629 = vst [vmem:[#allocation5] sm:$0xff] 0.0
    %vm630 = vcmask 9216
    %631 = vst.msk [vmem:[#allocation5] sm:$0x3] %vm630, %v628
    // Predicated region
    $region30: #{tpu_custom_call.1} parent=1 // pred_check
      _
    $region31: #{tpu_custom_call.1} parent=1 // pred_check_branch
      %633 = sbr.rel (0) target = $region33
    $region32: #{tpu_custom_call.1} parent=1 // pred_region
      %635 = vsyncadd [#allocation4], 0
      %s637 = sshll.u32 [#allocation5], 4
      %s638 = int_to_ptr.vmem [resolvable:$true] %s637
      %s639 = sshll.u32 %s6, 4
      %s640 = int_to_ptr.hbm [resolvable:$true] %s639
      %642 = dma.vmem_to_hbm [thread:$0]  %s638, 128, %s640, [#allocation4]
    $region33: #{tpu_custom_call.1} parent=1 // pred_fallthru
      _
    // Predicated region
    $region34: #{tpu_custom_call.1} parent=1 // pred_check
      _
    $region35: #{tpu_custom_call.1} parent=1 // pred_check_branch
      %644 = sbr.rel (0) target = $region37
    $region36: #{tpu_custom_call.1} parent=1 // pred_region
      %646 = dma.done [#allocation4], 128
    $region37: #{tpu_custom_call.1} parent=1 // pred_fallthru
      _
    %647 = vsyncpa [#allocation3], 1
    %648 = vsyncpa [#allocation4], 1

</llo_original>
